<compile_context>
chip_gen: v6e
topology: v6e:2x2x1
jax: 0.10.0
libtpu: 0.0.40
codegen_flags: <defaults>
</compile_context>

<pallas_src>
import numpy as np
import jax
import jax.numpy as jnp
from jax.experimental import pallas as pl
from jax.experimental.pallas import tpu as pltpu


# ----------------------------------------------------------------------------
# Deterministic Gaussian-derivative edge filter (gradImSnake.makeGaussEdgeFltr)
# ----------------------------------------------------------------------------
def make_gauss_edge_fltr(stdev, ndims=2):
    assert ndims == 2, "only 2-D supported"
    k = 2 * int(np.ceil(2.0 * stdev)) + 1
    xs = np.arange(k, dtype=np.float64) - k // 2
    g = np.exp(-0.5 * (xs / stdev) ** 2)
    g = g / g.sum()
    dg = -(xs / stdev ** 2) * np.exp(-0.5 * (xs / stdev) ** 2)
    fltr = np.zeros((ndims, 1, k, k), dtype=np.float32)
    fltr[0, 0] = np.outer(dg, g)   # derivative along rows (y)
    fltr[1, 0] = np.outer(g, dg)   # derivative along cols (x)
    return fltr, g, dg


def _left_band(taps, n):
    """B[i, j] = taps[j - i + p].  (B @ X) == 1-D cross-correlation of the rows
    of X with `taps`, zero padded with p = (k-1)//2 (matches
    F.conv2d(padding=k//2) along that axis)."""
    k = len(taps)
    p = (k - 1) // 2
    B = np.zeros((n, n), dtype=np.float64)
    for i in range(n):
        for j in range(n):
            d = j - i + p
            if 0 <= d < k:
                B[i, j] = taps[d]
    return B


def _right_band(taps, n):
    """(X @ B) == 1-D cross-correlation along the columns of X, zero padded."""
    return _left_band(taps, n).T


def _pick_strip(n, target=256):
    """Largest row-strip height TH <= target that divides n and is a multiple
    of 8 (or n itself when n <= target / no divisor found)."""
    if n <= target:
        return n
    for th in range(target, 7, -8):
        if n % th == 0:
            return th
    return n


# ----------------------------------------------------------------------------
# Kernel 1: gradient image (separable Gaussian-derivative conv on the MXU).
#   row pass : (2*TH, H) stacked [dg; g] band  @  (H, W) image   (one matmul)
#   col pass : (TH, W) @ (W, W) g / dg bands (extgradfac folded in)
# All matmul operands are bf16, accumulation in f32.
# ----------------------------------------------------------------------------
def _grad_im_kernel_factory(TH):
    def kernel(x_ref, brow_ref, bcolg_ref, bcoldg_ref, out_ref):
        x = x_ref[0]                                               # (H, W) bf16
        v = jnp.dot(brow_ref[0], x,
                    preferred_element_type=jnp.float32)            # (2*TH, W) f32
        v_bf = v.astype(jnp.bfloat16)
        out_ref[0, 0] = jnp.dot(v_bf[:TH], bcolg_ref[...],
                                preferred_element_type=jnp.float32)   # d/dy
        out_ref[0, 1] = jnp.dot(v_bf[TH:], bcoldg_ref[...],
                                preferred_element_type=jnp.float32)   # d/dx
    return kernel


def compute_grad_image(pred_dmap, g_taps, dg_taps, extgradfac, row_strip=256):
    N, C, H, W = pred_dmap.shape
    assert C == 1
    TH = _pick_strip(H, row_strip)
    n_strips = H // TH

    # Input image in bf16 (halves HBM traffic, full-rate MXU).
    x = pred_dmap.reshape(N, H, W).astype(jnp.bfloat16)

    # Host-side banded matrices (tiny, constant across the grid).
    brow_dg = _left_band(dg_taps, H)
    brow_g = _left_band(g_taps, H)
    brow_stack = np.zeros((n_strips, 2 * TH, H), dtype=np.float32)
    for t in range(n_strips):
        brow_stack[t, :TH] = brow_dg[t * TH:(t + 1) * TH]
        brow_stack[t, TH:] = brow_g[t * TH:(t + 1) * TH]
    brow_stack = jnp.asarray(brow_stack, jnp.bfloat16)                   # (S, 2TH, H)
    bcol_g = jnp.asarray(_right_band(g_taps, W) * extgradfac, jnp.bfloat16)   # (W, W)
    bcol_dg = jnp.asarray(_right_band(dg_taps, W) * extgradfac, jnp.bfloat16)  # (W, W)

    kern = _grad_im_kernel_factory(TH)
    return pl.pallas_call(
        kern,
        out_shape=jax.ShapeDtypeStruct((N, 2, H, W), jnp.float32),
        grid=(N, n_strips),
        in_specs=[
            pl.BlockSpec((1, H, W), lambda b, t: (b, 0, 0)),
            pl.BlockSpec((1, 2 * TH, H), lambda b, t: (t, 0, 0)),
            pl.BlockSpec((W, W), lambda b, t: (0, 0)),
            pl.BlockSpec((W, W), lambda b, t: (0, 0)),
        ],
        out_specs=pl.BlockSpec((1, 2, TH, W), lambda b, t: (b, 0, t, 0)),
        compiler_params=pltpu.CompilerParams(
            dimension_semantics=("parallel", "parallel")),
    )(x, brow_stack, bcol_g, bcol_dg)


# ----------------------------------------------------------------------------
# Kernel 2 (fused): render snake distance map + per-block MSE partial sums.
#   Per row strip: coords from 2-D iota, per-node (p - n)^2 on the VPU folded
#   into a running min, single sqrt, clip at dmax.  The squared-error partial
#   of the strip goes to a per-(batch, strip) output; the wrapper reduces it.
# ----------------------------------------------------------------------------
def _render_mse_kernel_factory(M, TH, W, dmax):
    unroll = bool(M <= 16)

    def kernel(nodes_ref, pred_ref, dm_ref, part_ref):
        b = pl.program_id(0)
        t = pl.program_id(1)

        row0 = (t * TH).astype(jnp.float32)
        yy = jax.lax.broadcasted_iota(jnp.float32, (TH, W), 0) + row0   # row coord
        xx = jax.lax.broadcasted_iota(jnp.float32, (TH, W), 1)          # col coord

        def body(i, dmin2):
            ny = nodes_ref[b, 2 * i]          # scalar reads from SMEM
            nx = nodes_ref[b, 2 * i + 1]
            dy = yy - ny
            dx = xx - nx
            return jnp.minimum(dmin2, dy * dy + dx * dx)

        init = jnp.full((TH, W), 1e30, dtype=jnp.float32)
        dmin2 = jax.lax.fori_loop(0, M, body, init, unroll=unroll)

        dmap = jnp.minimum(jnp.sqrt(dmin2), dmax)                 # one sqrt / strip
        dm_ref[0, 0] = dmap.astype(dm_ref.dtype)

        diff = pred_ref[0, 0] - dmap                              # (TH, W) f32
        part_ref[0, 0] = jnp.sum(diff * diff, axis=(0, 1), keepdims=True)

    return kernel


def render_snake_dmap_and_mse(pred_dmap, lbl_nodes, cropsz, dmax, row_strip=256):
    # lbl_nodes: (N, M, 2) float32 node coordinates (y, x) of each label graph.
    N, C, H, W = pred_dmap.shape
    assert C == 1 and tuple(cropsz) == (H, W)
    M = lbl_nodes.shape[1]
    TH = _pick_strip(H, row_strip)
    n_strips = H // TH

    # Flatten node coords to (N, 2*M) = [y0, x0, y1, x1, ...] for SMEM scalar reads.
    nodes_flat = lbl_nodes.astype(jnp.float32).reshape(N, 2 * M)

    kern = _render_mse_kernel_factory(M, TH, W, float(dmax))
    snake_dm, partials = pl.pallas_call(
        kern,
        out_shape=(jax.ShapeDtypeStruct((N, 1, H, W), jnp.float32),
                   jax.ShapeDtypeStruct((N, n_strips, 1, 1), jnp.float32)),
        grid=(N, n_strips),
        in_specs=[
            pl.BlockSpec(memory_space=pltpu.MemorySpace.SMEM),     # whole node table
            pl.BlockSpec((1, 1, TH, W), lambda b, t: (b, 0, t, 0)),
        ],
        out_specs=(
            pl.BlockSpec((1, 1, TH, W), lambda b, t: (b, 0, t, 0)),
            pl.BlockSpec((1, 1, 1, 1), lambda b, t: (b, t, 0, 0)),
        ),
        compiler_params=pltpu.CompilerParams(
            dimension_semantics=("parallel", "parallel")),
    )(nodes_flat, pred_dmap)

    loss = jnp.sum(partials) / float(N * C * H * W)
    return snake_dm, loss


# ----------------------------------------------------------------------------
# SnakeFastLoss forward (JAX / Pallas)
# ----------------------------------------------------------------------------
class SnakeFastLossPallas:
    def __init__(self, stepsz, alpha, beta, fltrstdev, ndims, nsteps,
                 cropsz, dmax, maxedgelen, extgradfac):
        self.stepsz = stepsz
        self.alpha = alpha
        self.beta = beta
        self.fltrstdev = fltrstdev
        self.ndims = ndims
        self.nsteps = nsteps
        self.cropsz = cropsz
        self.dmax = dmax
        self.maxedgelen = maxedgelen
        self.extgradfac = extgradfac
        self.fltr, self._g, self._dg = make_gauss_edge_fltr(fltrstdev, ndims)

    def forward(self, pred_dmap, lbl_nodes):
        # gradient image (cmptGradIm) * extgradfac -- separable bf16 MXU conv
        gimg = compute_grad_image(pred_dmap, self._g, self._dg, self.extgradfac)
        # TODO(synk): RibbonSnake.optim(self.nsteps) not translated (see header).
        # snake distance map + MSE partials fused into one Pallas kernel
        snake_dm, loss = render_snake_dmap_and_mse(
            pred_dmap, lbl_nodes, self.cropsz, self.dmax)
        self.gimg = gimg
        self.snake_dm = snake_dm
        return loss


if __name__ == "__main__":
    N, H, W = 2, 16, 16
    M = 8  # nodes per label graph

    key = jax.random.PRNGKey(0)
    k1, k2 = jax.random.split(key)
    pred_dmap = jax.random.uniform(k1, (N, 1, H, W), jnp.float32) * 4.0
    lbl_nodes = jax.random.uniform(k2, (N, M, 2), jnp.float32,
                                   minval=0.0, maxval=float(H - 1))

    mod = SnakeFastLossPallas(stepsz=0.1, alpha=0.01, beta=0.01, fltrstdev=1.0,
                              ndims=2, nsteps=10, cropsz=(H, W), dmax=4.0,
                              maxedgelen=2.0, extgradfac=10.0)

    loss = mod.forward(pred_dmap, lbl_nodes)
    jax.block_until_ready(loss)
    jax.block_until_ready(mod.gimg)
    jax.block_until_ready(mod.snake_dm)
    print("KERNEL_OK")
</pallas_src>

<mosaic_0001>
module attributes {stable_mosaic.version = 11 : i64} {
  func.func @kernel(%arg0: i32, %arg1: i32, %arg2: memref<1x16x16xbf16, #tpu.memory_space<vmem>>, %arg3: memref<1x32x16xbf16, #tpu.memory_space<vmem>>, %arg4: memref<16x16xbf16, #tpu.memory_space<vmem>>, %arg5: memref<16x16xbf16, #tpu.memory_space<vmem>>, %arg6: memref<1x2x16x16xf32, #tpu.memory_space<vmem>>) attributes {dimension_semantics = [#tpu.dimension_semantics<parallel>, #tpu.dimension_semantics<parallel>], iteration_bounds = array<i64: 2, 1>, scalar_prefetch = 0 : i64, scratch_operands = 0 : i64, tpu.core_type = #tpu.core_type<tc>, window_params = [{transform_indices = @transform_0, window_bounds = array<i64: 1, 16, 16>}, {transform_indices = @transform_1, window_bounds = array<i64: 1, 32, 16>}, {pipeline_mode = #tpu.pipeline_mode<synchronous>, transform_indices = @transform_2, window_bounds = array<i64: 16, 16>}, {pipeline_mode = #tpu.pipeline_mode<synchronous>, transform_indices = @transform_3, window_bounds = array<i64: 16, 16>}, {transform_indices = @transform_4, window_bounds = array<i64: 1, 2, 16, 16>}]} {
    %c0 = arith.constant 0 : index
    %c0_0 = arith.constant 0 : index
    %c0_1 = arith.constant 0 : index
    %0 = vector.load %arg2[%c0, %c0_0, %c0_1] : memref<1x16x16xbf16, #tpu.memory_space<vmem>>, vector<1x16x16xbf16>
    %1 = vector.shape_cast %0 : vector<1x16x16xbf16> to vector<16x16xbf16>
    %c0_2 = arith.constant 0 : index
    %c0_3 = arith.constant 0 : index
    %c0_4 = arith.constant 0 : index
    %2 = vector.load %arg3[%c0_2, %c0_3, %c0_4] : memref<1x32x16xbf16, #tpu.memory_space<vmem>>, vector<1x32x16xbf16>
    %3 = vector.shape_cast %2 : vector<1x32x16xbf16> to vector<32x16xbf16>
    %cst = arith.constant dense<0.000000e+00> : vector<32x16xf32>
    %4 = tpu.matmul %3, %1, %cst {dimension_numbers = #tpu.dot_dimension_numbers<[1], [0], [0], [1], [0, 0, 1, 1], [], []>} : vector<32x16xbf16>, vector<16x16xbf16>, vector<32x16xf32> -> vector<32x16xf32>
    %5 = arith.truncf %4 : vector<32x16xf32> to vector<32x16xbf16>
    %6 = vector.extract_strided_slice %5 {offsets = [0, 0], sizes = [16, 16], strides = [1, 1]} : vector<32x16xbf16> to vector<16x16xbf16>
    %c0_5 = arith.constant 0 : index
    %c0_6 = arith.constant 0 : index
    %7 = vector.load %arg4[%c0_5, %c0_6] : memref<16x16xbf16, #tpu.memory_space<vmem>>, vector<16x16xbf16>
    %cst_7 = arith.constant dense<0.000000e+00> : vector<16x16xf32>
    %8 = tpu.matmul %6, %7, %cst_7 {dimension_numbers = #tpu.dot_dimension_numbers<[1], [0], [0], [1], [0, 0, 1, 1], [], []>} : vector<16x16xbf16>, vector<16x16xbf16>, vector<16x16xf32> -> vector<16x16xf32>
    %c0_8 = arith.constant 0 : index
    %c0_9 = arith.constant 0 : index
    %c0_10 = arith.constant 0 : index
    %c0_11 = arith.constant 0 : index
    %9 = vector.load %arg6[%c0_8, %c0_9, %c0_10, %c0_11] : memref<1x2x16x16xf32, #tpu.memory_space<vmem>>, vector<1x1x16x16xf32>
    %10 = vector.shape_cast %9 : vector<1x1x16x16xf32> to vector<16x16xf32>
    %11 = vector.shape_cast %8 : vector<16x16xf32> to vector<1x1x16x16xf32>
    tpu.vector_store %arg6[%c0_8, %c0_9, %c0_10, %c0_11], %11 {strides = array<i32>} : memref<1x2x16x16xf32, #tpu.memory_space<vmem>>, vector<1x1x16x16xf32>,
    %12 = vector.extract_strided_slice %5 {offsets = [16, 0], sizes = [16, 16], strides = [1, 1]} : vector<32x16xbf16> to vector<16x16xbf16>
    %c0_12 = arith.constant 0 : index
    %c0_13 = arith.constant 0 : index
    %13 = vector.load %arg5[%c0_12, %c0_13] : memref<16x16xbf16, #tpu.memory_space<vmem>>, vector<16x16xbf16>
    %cst_14 = arith.constant dense<0.000000e+00> : vector<16x16xf32>
    %14 = tpu.matmul %12, %13, %cst_14 {dimension_numbers = #tpu.dot_dimension_numbers<[1], [0], [0], [1], [0, 0, 1, 1], [], []>} : vector<16x16xbf16>, vector<16x16xbf16>, vector<16x16xf32> -> vector<16x16xf32>
    %c0_15 = arith.constant 0 : index
    %c1 = arith.constant 1 : index
    %c0_16 = arith.constant 0 : index
    %c0_17 = arith.constant 0 : index
    %15 = vector.load %arg6[%c0_15, %c1, %c0_16, %c0_17] : memref<1x2x16x16xf32, #tpu.memory_space<vmem>>, vector<1x1x16x16xf32>
    %16 = vector.shape_cast %15 : vector<1x1x16x16xf32> to vector<16x16xf32>
    %17 = vector.shape_cast %14 : vector<16x16xf32> to vector<1x1x16x16xf32>
    tpu.vector_store %arg6[%c0_15, %c1, %c0_16, %c0_17], %17 {strides = array<i32>} : memref<1x2x16x16xf32, #tpu.memory_space<vmem>>, vector<1x1x16x16xf32>,
    return
  }
  func.func @transform_0(%arg0: i32, %arg1: i32) -> (i32, i32, i32) {
    %c0_i32 = arith.constant 0 : i32
    %c0_i32_0 = arith.constant 0 : i32
    %c0_i32_1 = arith.constant 0 : i32
    return %arg0, %c0_i32, %c0_i32_0 : i32, i32, i32
  }
  func.func @transform_1(%arg0: i32, %arg1: i32) -> (i32, i32, i32) {
    %c0_i32 = arith.constant 0 : i32
    %c0_i32_0 = arith.constant 0 : i32
    %c0_i32_1 = arith.constant 0 : i32
    return %arg1, %c0_i32, %c0_i32_0 : i32, i32, i32
  }
  func.func @transform_2(%arg0: i32, %arg1: i32) -> (i32, i32) {
    %c0_i32 = arith.constant 0 : i32
    %c0_i32_0 = arith.constant 0 : i32
    %c0_i32_1 = arith.constant 0 : i32
    return %c0_i32, %c0_i32_0 : i32, i32
  }
  func.func @transform_3(%arg0: i32, %arg1: i32) -> (i32, i32) {
    %c0_i32 = arith.constant 0 : i32
    %c0_i32_0 = arith.constant 0 : i32
    %c0_i32_1 = arith.constant 0 : i32
    return %c0_i32, %c0_i32_0 : i32, i32
  }
  func.func @transform_4(%arg0: i32, %arg1: i32) -> (i32, i32, i32, i32) {
    %c0_i32 = arith.constant 0 : i32
    %c0_i32_0 = arith.constant 0 : i32
    %c0_i32_1 = arith.constant 0 : i32
    return %arg0, %c0_i32, %arg1, %c0_i32_0 : i32, i32, i32, i32
  }
}

</mosaic_0001>

<llo_original>
// kernel: tpu_custom_call.1
$region0: #{tpu_custom_call.1}
  #allocation0 [shape = 'u32[]', space=smem, size = 0x4, offset = 0x4, fixed_abs, tag = 'smem constant byte address 0x4 - core index']
  #allocation1 [shape = 'u32[144,128]{1,0:T(1,128)}', space=vmem, size = 0x12000, scoped, tag = 'internal scratch']
  %s0 = inlined_call_operand.vmem [shape: bf16[2,16,16], index: 0, kind: input, shape index: {}]
  %s1 = inlined_call_operand.vmem [shape: bf16[1,32,16], index: 1, kind: input, shape index: {}]
  %s2 = inlined_call_operand.vmem [shape: bf16[16,16], index: 2, kind: input, shape index: {}]
  %s3 = inlined_call_operand.hbm [shape: bf16[16,16], index: 3, kind: input, shape index: {}]
  %s4 = inlined_call_operand.hbm [shape: f32[2,2,16,16], index: 4, kind: output, shape index: {}]
  %s5 = sld [smem:[#allocation0]]
  $region53: #{tpu_custom_call.1} parent=0
    _
  %s7 = ssub.s32 1, %s5
  %s8 = scalar_select 0, %s7, %s5
  $region1: #{tpu_custom_call.1} parent=0
    #allocation2 [shape = 'u8[4096]{0}', space=vmem, size = 0x1000, scoped, tag = 'input window, operand 3, single buffered']
    #allocation3 [shape = 's32[2]{0}', space=sflag, size = 0x8, scoped, tag = 'scoped memory for tpu_custom_call.1']
    #allocation4 [shape = 's32[2]{0}', space=sflag, size = 0x8, scoped, tag = 'scoped memory for tpu_custom_call.1']
    #allocation5 [shape = 'u8[32768]{0}', space=vmem, size = 0x8000, scoped, tag = 'output window, operand 0']
    %9 = vsyncpa [#allocation3], 0
    %10 = vsyncpa [#allocation4], 0
    %s11 = scalar_lea.sflag [#allocation4], 1
    %12 = vsyncpa %s11, 0
    loop: start=0, step=1, limit=4
    $region2: #{tpu_custom_call.1} parent=1 // loop_pre_header
      _
    $region3: #{tpu_custom_call.1} parent=1 // loop_header
      %s14 = sphi 0, %s18
      %p15 = scmp.ge.s32.totalorder %s14, 4
      %s21 = sphi 0, %s33
      %s22 = sphi 0, %s29
      %s23 = sphi 0, %s21
      %s24 = sphi 0, %s22
      %s25 = sphi 0, %s23
      %s26 = sphi 0, %s24
      %s36 = sphi 0, %s38
      %s39 = sphi 0, %s36
      %s40 = sphi 0, %s39
      %s56 = sphi 0, %s40
      %s62 = sphi 0, %s64
      %s65 = sphi 0, %s62
      %s66 = sphi 0, %s65
      %s82 = sphi 0, %s66
      %s86 = sphi 0, %s86
      %s88 = sphi 0, %s86
      %s89 = sphi 0, %s88
      %s103 = sphi 0, %s89
      %s107 = sphi 0, %s107
      %s109 = sphi 0, %s107
      %s110 = sphi 0, %s109
      %s124 = sphi 0, %s110
      %s132 = sphi 0, %s134
      %s135 = sphi 0, %s132
      %s136 = sphi 0, %s135
      %s152 = sphi 0, %s136
    $region4: #{tpu_custom_call.1} parent=1 // loop_header_branch
      %17 = sbr.rel (%p15) target = $region8
    $region5: #{tpu_custom_call.1} parent=1 // loop_body
      %s19 = ssub.s32 %s14, 1
      %s20 = ssub.s32 %s14, 2
      %s27 = sadd.s32 1, %s22
      %p28 = scmp.ge.s32.totalorder %s27, 1
      %s29 = scalar_select %p28, 0, %s27
      %s30 = sadd.s32 1, %s21
      %s31 = scalar_select %p28, %s30, %s21
      %p32 = scmp.ge.s32.totalorder %s31, 2
      %s33 = scalar_select %p32, 0, %s31
      %s34 = ssub.s32 %s21, %s33
      %p35 = scmp.eq.s32.totalorder %s34, 0
      %s37 = sadd.s32 %s36, 1
      %s38 = scalar_select %p35, %s36, %s37
      %p41 = pneg %p35
      %p42 = scmp.eq.s32.totalorder %s14, 1
      %p43 = por %p41, %p42
      %p44 = scmp.ne.s32.totalorder %s36, %s39
      %p45 = scmp.eq.s32.totalorder %s14, 0
      %p46 = por %p44, %p45
      %p47 = scmp.ne.s32.totalorder %s36, %s39
      %p48 = scmp.eq.s32.totalorder %s19, 1
      %p49 = por %p47, %p48
      %p50 = scmp.ne.s32.totalorder %s39, %s40
      %p51 = scmp.eq.s32.totalorder %s19, 0
      %p52 = por %p50, %p51
      %p53 = scmp.ne.s32.totalorder %s39, %s40
      %p54 = scmp.eq.s32.totalorder %s20, 1
      %p55 = por %p53, %p54
      %p57 = scmp.ne.s32.totalorder %s40, %s56
      %p58 = scmp.eq.s32.totalorder %s20, 0
      %p59 = por %p57, %p58
      %s60 = ssub.s32 %s22, %s29
      %p61 = scmp.eq.s32.totalorder %s60, 0
      %s63 = sadd.s32 %s62, 1
      %s64 = scalar_select %p61, %s62, %s63
      %p67 = pneg %p61
      %p68 = scmp.eq.s32.totalorder %s14, 1
      %p69 = por %p67, %p68
      %p70 = scmp.ne.s32.totalorder %s62, %s65
      %p71 = scmp.eq.s32.totalorder %s14, 0
      %p72 = por %p70, %p71
      %p73 = scmp.ne.s32.totalorder %s62, %s65
      %p74 = scmp.eq.s32.totalorder %s19, 1
      %p75 = por %p73, %p74
      %p76 = scmp.ne.s32.totalorder %s65, %s66
      %p77 = scmp.eq.s32.totalorder %s19, 0
      %p78 = por %p76, %p77
      %p79 = scmp.ne.s32.totalorder %s65, %s66
      %p80 = scmp.eq.s32.totalorder %s20, 1
      %p81 = por %p79, %p80
      %p83 = scmp.ne.s32.totalorder %s66, %s82
      %p84 = scmp.eq.s32.totalorder %s20, 0
      %p85 = por %p83, %p84
      %s87 = sadd.s32 %s86, 1
      %p90 = scmp.eq.s32.totalorder %s14, 1
      %p91 = scmp.ne.s32.totalorder %s86, %s88
      %p92 = scmp.eq.s32.totalorder %s14, 0
      %p93 = por %p91, %p92
      %p94 = scmp.ne.s32.totalorder %s86, %s88
      %p95 = scmp.eq.s32.totalorder %s19, 1
      %p96 = por %p94, %p95
      %p97 = scmp.ne.s32.totalorder %s88, %s89
      %p98 = scmp.eq.s32.totalorder %s19, 0
      %p99 = por %p97, %p98
      %p100 = scmp.ne.s32.totalorder %s88, %s89
      %p101 = scmp.eq.s32.totalorder %s20, 1
      %p102 = por %p100, %p101
      %p104 = scmp.ne.s32.totalorder %s89, %s103
      %p105 = scmp.eq.s32.totalorder %s20, 0
      %p106 = por %p104, %p105
      %s108 = sadd.s32 %s107, 1
      %p111 = scmp.eq.s32.totalorder %s14, 1
      %p112 = scmp.ne.s32.totalorder %s107, %s109
      %p113 = scmp.eq.s32.totalorder %s14, 0
      %p114 = por %p112, %p113
      %p115 = scmp.ne.s32.totalorder %s107, %s109
      %p116 = scmp.eq.s32.totalorder %s19, 1
      %p117 = por %p115, %p116
      %p118 = scmp.ne.s32.totalorder %s109, %s110
      %p119 = scmp.eq.s32.totalorder %s19, 0
      %p120 = por %p118, %p119
      %p121 = scmp.ne.s32.totalorder %s109, %s110
      %p122 = scmp.eq.s32.totalorder %s20, 1
      %p123 = por %p121, %p122
      %p125 = scmp.ne.s32.totalorder %s110, %s124
      %p126 = scmp.eq.s32.totalorder %s20, 0
      %p127 = por %p125, %p126
      %s128 = ssub.s32 %s21, %s33
      %s129 = ssub.s32 %s22, %s29
      %s130 = sor.u32 %s128, %s129
      %p131 = scmp.eq.s32.totalorder %s130, 0
      %s133 = sadd.s32 %s132, 1
      %s134 = scalar_select %p131, %s132, %s133
      %p137 = pneg %p131
      %p138 = scmp.eq.s32.totalorder %s14, 1
      %p139 = por %p137, %p138
      %p140 = scmp.ne.s32.totalorder %s132, %s135
      %p141 = scmp.eq.s32.totalorder %s14, 0
      %p142 = por %p140, %p141
      %p143 = scmp.ne.s32.totalorder %s132, %s135
      %p144 = scmp.eq.s32.totalorder %s19, 1
      %p145 = por %p143, %p144
      %p146 = scmp.ne.s32.totalorder %s135, %s136
      %p147 = scmp.eq.s32.totalorder %s19, 0
      %p148 = por %p146, %p147
      %p149 = scmp.ne.s32.totalorder %s135, %s136
      %p150 = scmp.eq.s32.totalorder %s20, 1
      %p151 = por %p149, %p150
      %p153 = scmp.ne.s32.totalorder %s136, %s152
      %p154 = scmp.eq.s32.totalorder %s20, 0
      %p155 = por %p153, %p154
      %p156 = scmp.le.s32.totalorder 1, %s14
      %p157 = scmp.lt.s32.totalorder %s14, 3
      %p158 = pnand %p156, %p157
      %p159 = pneg %p158
      // Predicated region
      $region9: #{tpu_custom_call.1} parent=5 // pred_check
        _
      $region10: #{tpu_custom_call.1} parent=5 // pred_check_branch
        %161 = sbr.rel (%p158) target = $region12
      $region11: #{tpu_custom_call.1} parent=5 // pred_region
        %s162 = ssub.s32 %s14, 1
        // Predicated region
        $region13: #{tpu_custom_call.1} parent=11 // pred_check
          %p163 = pneg %p78
        $region14: #{tpu_custom_call.1} parent=11 // pred_check_branch
          %165 = sbr.rel (%p163) target = $region16
        $region15: #{tpu_custom_call.1} parent=11 // pred_region
          %p166 = scmp.lt.s32.totalorder %s24, 0
          %s167 = scalar_select %p166, %s24, 0
          %s168 = smul.addr %s167, 4
          %s169 = smul.addr %s168, 4
          %s170 = scalar_lea.vmem %s1, %s169
        $region16: #{tpu_custom_call.1} parent=11 // pred_fallthru
          _
        // Predicated region
        $region17: #{tpu_custom_call.1} parent=11 // pred_check
          %p171 = pneg %p99
        $region18: #{tpu_custom_call.1} parent=11 // pred_check_branch
          %173 = sbr.rel (%p171) target = $region20
        $region19: #{tpu_custom_call.1} parent=11 // pred_region
          _
        $region20: #{tpu_custom_call.1} parent=11 // pred_fallthru
          _
        // Predicated region
        $region21: #{tpu_custom_call.1} parent=11 // pred_check
          %p174 = pneg %p120
        $region22: #{tpu_custom_call.1} parent=11 // pred_check_branch
          %176 = sbr.rel (%p174) target = $region24
        $region23: #{tpu_custom_call.1} parent=11 // pred_region
          %s178 = ssub.s32 128, 128
          %179 = vsyncadd [#allocation3], %s178
          %s180 = sshll.u32 [#allocation2], 4
          %s181 = int_to_ptr.vmem [resolvable:$true] %s180
          %186 = dma.hbm_to_vmem [thread:$0]  %s3, 128, %s181, [#allocation3], 64, 64, 4
        $region24: #{tpu_custom_call.1} parent=11 // pred_fallthru
          _
      $region12: #{tpu_custom_call.1} parent=5 // pred_fallthru
        _
      %p187 = scmp.lt.s32.totalorder %s14, 2
      // Predicated region
      $region25: #{tpu_custom_call.1} parent=5 // pred_check
        %p188 = pneg %p187
      $region26: #{tpu_custom_call.1} parent=5 // pred_check_branch
        %190 = sbr.rel (%p188) target = $region28
      $region27: #{tpu_custom_call.1} parent=5 // pred_region
        // Predicated region
        $region29: #{tpu_custom_call.1} parent=27 // pred_check
          %p191 = pneg %p46
        $region30: #{tpu_custom_call.1} parent=27 // pred_check_branch
          %193 = sbr.rel (%p191) target = $region32
        $region31: #{tpu_custom_call.1} parent=27 // pred_region
          %p194 = scmp.lt.s32.totalorder %s21, 1
          %s195 = scalar_select %p194, %s21, 1
          %s196 = smul.addr %s195, 2
          %s197 = smul.addr %s196, 4
          %s198 = scalar_lea.vmem %s0, %s197
        $region32: #{tpu_custom_call.1} parent=27 // pred_fallthru
          _
      $region28: #{tpu_custom_call.1} parent=5 // pred_fallthru
        _
      %p199 = scmp.le.s32.totalorder 1, %s14
      %p200 = scmp.lt.s32.totalorder %s14, 3
      %p201 = pnand %p199, %p200
      %p202 = pneg %p201
      // Predicated region
      $region33: #{tpu_custom_call.1} parent=5 // pred_check
        _
      $region34: #{tpu_custom_call.1} parent=5 // pred_check_branch
        %204 = sbr.rel (%p201) target = $region36
      $region35: #{tpu_custom_call.1} parent=5 // pred_region
        %s205 = ssub.s32 %s14, 1
        // Predicated region
        $region37: #{tpu_custom_call.1} parent=35 // pred_check
          %p206 = pneg %p120
        $region38: #{tpu_custom_call.1} parent=35 // pred_check_branch
          %208 = sbr.rel (%p206) target = $region40
        $region39: #{tpu_custom_call.1} parent=35 // pred_region
          %209 = dma.done [#allocation3], 128
        $region40: #{tpu_custom_call.1} parent=35 // pred_fallthru
          _
        %p210 = scmp.lt.s32.totalorder %s23, 1
        %s211 = scalar_select %p210, %s23, 1
        %s212 = smul.addr %s211, 2
        %s213 = smul.addr %s212, 4
        %s214 = scalar_lea.vmem %s0, %s213
        %p215 = pneg %p52
        %p216 = pneg %p49
        %p217 = scmp.lt.s32.totalorder %s24, 0
        %s218 = scalar_select %p217, %s24, 0
        %s219 = smul.addr %s218, 4
        %s220 = smul.addr %s219, 4
        %s221 = scalar_lea.vmem %s1, %s220
        %p222 = pneg %p78
        %p223 = pneg %p75
        %p224 = pneg %p99
        %p225 = pneg %p96
        %p226 = pneg %p120
        %p227 = pneg %p117
        %p228 = pneg %p148
        %p229 = pneg %p145
        %s230 = sand.u32 %s135, 1
        %s231 = scalar_lea.sflag [#allocation4], %s230
        %s232 = sand.u32 %s135, 1
        %s233 = smul.addr %s232, 32
        %s234 = scalar_lea.vmem [#allocation5], %s233
        %p235 = scmp.lt.s32.totalorder %s23, 1
        %s236 = scalar_select %p235, %s23, 1
        %s237 = smul.addr %s236, 2
        %s238 = smul.addr %s237, 4
        %s239 = scalar_lea.vmem %s0, %s238
        %p240 = scmp.lt.s32.totalorder %s24, 0
        %s241 = scalar_select %p240, %s24, 0
        %s242 = smul.addr %s241, 4
        %s243 = smul.addr %s242, 4
        %s244 = scalar_lea.vmem %s1, %s243
        %s245 = smul.u32 2, %s24
        %v247 = vld [vmem:[%s239] sm:$0xf]
        %v248 = vld [vmem:[%s239 + $0x4] sm:$0xf]
        %v249 = vld [vmem:[%s244] sm:$0xf]
        %v250 = vld [vmem:[%s244 + $0x4] sm:$0xf]
        %v251 = vld [vmem:[%s244 + $0x8] sm:$0xf]
        %v252 = vld [vmem:[%s244 + $0xc] sm:$0xf]
        %v257 = vunpack.c.l.b16 %v249
        %v258 = vunpack.c.l.b16 %v250
        %v259 = vunpack.c.l.b16 %v251
        %v260 = vunpack.c.l.b16 %v252
        %v261 = vpack.c.b16 %v258, %v257
        %v262 = vpack.c.b16 %v260, %v259
        %v265 = vunpack.c.l.b16 %v247
        %v266 = vunpack.c.l.b16 %v248
        %v267 = vpack.c.b16 %v266, %v265
        %vm269 = vcmask 130048
        %v271 = vsel %vm269, %v261, 0
        %v274 = vsel %vm269, %v262, 0
        %276 = vmatprep.subr.bf16.mxu0 0
        %277 = vmatpush1.bf16.msra.mxu0 0
        %278 = vmatprep.subr.bf16.mxu0 0
        %279 = vmatpush1.bf16.msra.mxu0 0
        %280 = vmatprep.subr.bf16.mxu0 0
        %281 = vmatpush1.bf16.msra.mxu0 0
        %282 = vmatprep.subr.bf16.mxu0 0
        %283 = vmatpush1.bf16.msra.mxu0 0
        %284 = vmatprep.subr.bf16.mxu0 0
        %285 = vmatpush1.bf16.msra.mxu0 0
        %286 = vmatprep.subr.bf16.mxu0 0
        %287 = vmatpush1.bf16.msra.mxu0 0
        %288 = vmatprep.subr.bf16.mxu0 0
        %289 = vmatpush1.bf16.msra.mxu0 0
        %290 = vmatprep.subr.bf16.mxu0 0
        %291 = vmatpush1.bf16.msra.mxu0 %v267
        %292 = vmatprep.subr.bf16.mxu0 0
        %293 = vmatpush2.bf16.msra.mxu0 0
        %294 = vmatprep.subr.bf16.mxu0 0
        %295 = vmatpush2.bf16.msra.mxu0 0
        %296 = vmatprep.subr.bf16.mxu0 0
        %297 = vmatpush2.bf16.msra.mxu0 0
        %298 = vmatprep.subr.bf16.mxu0 0
        %299 = vmatpush2.bf16.msra.mxu0 0
        %300 = vmatprep.subr.bf16.mxu0 0
        %301 = vmatpush2.bf16.msra.mxu0 0
        %302 = vmatprep.subr.bf16.mxu0 0
        %303 = vmatpush2.bf16.msra.mxu0 0
        %304 = vmatprep.subr.bf16.mxu0 0
        %305 = vmatpush2.bf16.msra.mxu0 0
        %306 = vmatprep.subr.bf16.mxu0 0
        %307 = vmatpush2.bf16.msra.mxu0 0
        %308 = vmatprep.mubr.bf16.mxu0 0
        %309 = vmatmul.mubr.bf16.gmra.mxu0 %v271
        %v310 = vpop.f32.mrf.mxu0
        %v311 = vadd.f32 0.0, %v310
        %v312 = vpop.f32.mrf.mxu0
        %v313 = vpop.f32.mrf.mxu0
        %v314 = vadd.f32 0.0, %v313
        %v315 = vpop.f32.mrf.mxu0
        %316 = vmatprep.mubr.bf16.mxu0 0
        %317 = vmatmul.mubr.bf16.gmra.mxu0 %v274
        %v318 = vpop.f32.mrf.mxu0
        %v319 = vadd.f32 0.0, %v318
        %v320 = vpop.f32.mrf.mxu0
        %v321 = vpop.f32.mrf.mxu0
        %v322 = vadd.f32 0.0, %v321
        %v323 = vpop.f32.mrf.mxu0
        %324 = vdwg.mxu0
        %v325 = vpack.c.bf16 %v314, %v311
        %v326 = vpack.c.bf16 %v322, %v319
        %v327 = vld [vmem:[%s2] sm:$0xf]
        %v328 = vld [vmem:[%s2 + $0x4] sm:$0xf]
        %v331 = vunpack.c.l.b16 %v327
        %v332 = vunpack.c.l.b16 %v328
        %v333 = vpack.c.b16 %v332, %v331
        %v336 = vsel %vm269, %v325, 0
        %338 = vmatprep.subr.bf16.mxu0 0
        %339 = vmatpush1.bf16.msra.mxu0 0
        %340 = vmatprep.subr.bf16.mxu0 0
        %341 = vmatpush1.bf16.msra.mxu0 0
        %342 = vmatprep.subr.bf16.mxu0 0
        %343 = vmatpush1.bf16.msra.mxu0 0
        %344 = vmatprep.subr.bf16.mxu0 0
        %345 = vmatpush1.bf16.msra.mxu0 0
        %346 = vmatprep.subr.bf16.mxu0 0
        %347 = vmatpush1.bf16.msra.mxu0 0
        %348 = vmatprep.subr.bf16.mxu0 0
        %349 = vmatpush1.bf16.msra.mxu0 0
        %350 = vmatprep.subr.bf16.mxu0 0
        %351 = vmatpush1.bf16.msra.mxu0 0
        %352 = vmatprep.subr.bf16.mxu0 0
        %353 = vmatpush1.bf16.msra.mxu0 %v333
        %354 = vmatprep.subr.bf16.mxu0 0
        %355 = vmatpush2.bf16.msra.mxu0 0
        %356 = vmatprep.subr.bf16.mxu0 0
        %357 = vmatpush2.bf16.msra.mxu0 0
        %358 = vmatprep.subr.bf16.mxu0 0
        %359 = vmatpush2.bf16.msra.mxu0 0
        %360 = vmatprep.subr.bf16.mxu0 0
        %361 = vmatpush2.bf16.msra.mxu0 0
        %362 = vmatprep.subr.bf16.mxu0 0
        %363 = vmatpush2.bf16.msra.mxu0 0
        %364 = vmatprep.subr.bf16.mxu0 0
        %365 = vmatpush2.bf16.msra.mxu0 0
        %366 = vmatprep.subr.bf16.mxu0 0
        %367 = vmatpush2.bf16.msra.mxu0 0
        %368 = vmatprep.subr.bf16.mxu0 0
        %369 = vmatpush2.bf16.msra.mxu0 0
        %370 = vmatprep.mubr.bf16.mxu0 0
        %371 = vmatmul.mubr.bf16.gmra.mxu0 %v336
        %v372 = vpop.f32.mrf.mxu0
        %v373 = vadd.f32 0.0, %v372
        %v374 = vpop.f32.mrf.mxu0
        %v375 = vpop.f32.mrf.mxu0
        %v376 = vadd.f32 0.0, %v375
        %v377 = vpop.f32.mrf.mxu0
        %378 = vdwg.mxu0
        %379 = vst.msk [vmem:[%s234] sm:$0xff] %vm269, %v373
        %380 = vst.msk [vmem:[%s234 + $0x8] sm:$0xff] %vm269, %v376
        %v381 = vld [vmem:[#allocation2] sm:$0xf]
        %v382 = vld [vmem:[#allocation2 + $0x4] sm:$0xf]
        %v385 = vunpack.c.l.b16 %v381
        %v386 = vunpack.c.l.b16 %v382
        %v387 = vpack.c.b16 %v386, %v385
        %v390 = vsel %vm269, %v326, 0
        %392 = vmatprep.subr.bf16.mxu0 0
        %393 = vmatpush1.bf16.msra.mxu0 0
        %394 = vmatprep.subr.bf16.mxu0 0
        %395 = vmatpush1.bf16.msra.mxu0 0
        %396 = vmatprep.subr.bf16.mxu0 0
        %397 = vmatpush1.bf16.msra.mxu0 0
        %398 = vmatprep.subr.bf16.mxu0 0
        %399 = vmatpush1.bf16.msra.mxu0 0
        %400 = vmatprep.subr.bf16.mxu0 0
        %401 = vmatpush1.bf16.msra.mxu0 0
        %402 = vmatprep.subr.bf16.mxu0 0
        %403 = vmatpush1.bf16.msra.mxu0 0
        %404 = vmatprep.subr.bf16.mxu0 0
        %405 = vmatpush1.bf16.msra.mxu0 0
        %406 = vmatprep.subr.bf16.mxu0 0
        %407 = vmatpush1.bf16.msra.mxu0 %v387
        %408 = vmatprep.subr.bf16.mxu0 0
        %409 = vmatpush2.bf16.msra.mxu0 0
        %410 = vmatprep.subr.bf16.mxu0 0
        %411 = vmatpush2.bf16.msra.mxu0 0
        %412 = vmatprep.subr.bf16.mxu0 0
        %413 = vmatpush2.bf16.msra.mxu0 0
        %414 = vmatprep.subr.bf16.mxu0 0
        %415 = vmatpush2.bf16.msra.mxu0 0
        %416 = vmatprep.subr.bf16.mxu0 0
        %417 = vmatpush2.bf16.msra.mxu0 0
        %418 = vmatprep.subr.bf16.mxu0 0
        %419 = vmatpush2.bf16.msra.mxu0 0
        %420 = vmatprep.subr.bf16.mxu0 0
        %421 = vmatpush2.bf16.msra.mxu0 0
        %422 = vmatprep.subr.bf16.mxu0 0
        %423 = vmatpush2.bf16.msra.mxu0 0
        %424 = vmatprep.mubr.bf16.mxu0 0
        %425 = vmatmul.mubr.bf16.gmra.mxu0 %v390
        %v426 = vpop.f32.mrf.mxu0
        %v427 = vadd.f32 0.0, %v426
        %v428 = vpop.f32.mrf.mxu0
        %v429 = vpop.f32.mrf.mxu0
        %v430 = vadd.f32 0.0, %v429
        %v431 = vpop.f32.mrf.mxu0
        %432 = vdwg.mxu0
        %s433 = scalar_lea.vmem %s234, 16 [#allocation5]
        %434 = vst.msk [vmem:[%s433] sm:$0xff] %vm269, %v427
        %435 = vst.msk [vmem:[%s433 + $0x8] sm:$0xff] %vm269, %v430
        %s436 = sand.u32 %s135, 1
        %s437 = scalar_lea.sflag [#allocation4], %s436
        %s438 = sand.u32 %s135, 1
        %s439 = smul.addr %s438, 32
        %s440 = scalar_lea.vmem [#allocation5], %s439
        // Predicated region
        $region41: #{tpu_custom_call.1} parent=35 // pred_check
          %p441 = pneg %p145
        $region42: #{tpu_custom_call.1} parent=35 // pred_check_branch
          %443 = sbr.rel (%p441) target = $region44
        $region43: #{tpu_custom_call.1} parent=35 // pred_region
          %s444 = smul.u32 2, %s24
          %s446 = ssub.s32 512, 512
          %447 = vsyncadd %s437, %s446
          %s448 = smul.addr %s23, 4
          %s449 = sadd.s32 %s444, %s448
          %s450 = smul.addr %s449, 128
          %s451 = scalar_lea.hbm %s4, %s450
          %s452 = sshll.u32 %s440, 4
          %s453 = int_to_ptr.vmem [resolvable:$true] %s452
          %458 = dma.vmem_to_hbm [thread:$0]  %s453, 512, %s451, %s437, 128, 128, 8
        $region44: #{tpu_custom_call.1} parent=35 // pred_fallthru
          _
      $region36: #{tpu_custom_call.1} parent=5 // pred_fallthru
        _
      %p459 = scmp.le.s32.totalorder 2, %s14
      // Predicated region
      $region45: #{tpu_custom_call.1} parent=5 // pred_check
        %p460 = pneg %p459
      $region46: #{tpu_custom_call.1} parent=5 // pred_check_branch
        %462 = sbr.rel (%p460) target = $region48
      $region47: #{tpu_custom_call.1} parent=5 // pred_region
        %s463 = ssub.s32 %s14, 2
        // Predicated region
        $region49: #{tpu_custom_call.1} parent=47 // pred_check
          %p464 = pneg %p151
        $region50: #{tpu_custom_call.1} parent=47 // pred_check_branch
          %466 = sbr.rel (%p464) target = $region52
        $region51: #{tpu_custom_call.1} parent=47 // pred_region
          %s467 = sand.u32 %s136, 1
          %s468 = scalar_lea.sflag [#allocation4], %s467
          %s469 = sand.u32 %s136, 1
          %s470 = smul.addr %s469, 32
          %s471 = scalar_lea.vmem [#allocation5], %s470
          %472 = dma.done %s468, 512
        $region52: #{tpu_custom_call.1} parent=47 // pred_fallthru
          _
      $region48: #{tpu_custom_call.1} parent=5 // pred_fallthru
        _
    $region6: #{tpu_custom_call.1} parent=1 // loop_footer
      %s18 = sadd.s32 1, %s14
    $region7: #{tpu_custom_call.1} parent=1 // loop_footer_branch
      %13 = sbr.rel target = $region3
    $region8: #{tpu_custom_call.1} parent=1 // loop_exit
      _
    %473 = vsyncpa [#allocation3], 1
    %s474 = scalar_lea.sflag [#allocation3], 1
    %475 = vsyncpa %s474, 1
    %476 = vsyncpa [#allocation4], 1
    %s477 = scalar_lea.sflag [#allocation4], 1
    %478 = vsyncpa %s477, 1

</llo_original>
